<compile_context>
chip_gen: v7x
topology: tpu7x:2x2x1
jax: 0.10.0
libtpu: 0.0.40
codegen_flags: <defaults>
</compile_context>

<pallas_src>
import functools

import jax
import jax.numpy as jnp
from jax.experimental import pallas as pl
from jax.experimental.pallas import tpu as pltpu

CLAMP = 2.0          # c.clamp in the original config
IN_1 = 6
IN_2 = 6
SPLIT1 = IN_1 * 4    # 24  (harr=True)
SPLIT2 = IN_2 * 4    # 24
C_TOTAL = SPLIT1 + SPLIT2


def _e(s):
    # exp(clamp * 2 * (sigmoid(s) - 0.5)) == exp(clamp * tanh(s/2))  (exact)
    return jnp.exp(CLAMP * jnp.tanh(0.5 * s))


def inv_block_kernel(x_ref,
                     wfp_ref, bfp_ref,   # fused [f; p]: (2*split1, split2), (2*split1, 1)
                     wry_ref, bry_ref,   # fused [r; y]: (2*split2, split1), (2*split2, 1)
                     o_ref,
                     *, split1, split2):
    # x_ref / o_ref: (C, TM) channels-major tile (batch dim squeezed away).
    # split1 is a multiple of 8 -> sublane slices stay tile-aligned (no copies).
    x1 = x_ref[:split1, :].astype(jnp.float32)   # (split1, TM)
    x2 = x_ref[split1:, :].astype(jnp.float32)   # (split2, TM)

    # [t2; s2] = W_fp @ x2 + b_fp      (single fused MXU pass)
    ts = jnp.dot(wfp_ref[...], x2, preferred_element_type=jnp.float32) + bfp_ref[...]
    t2 = ts[:split1, :]
    s2 = ts[split1:, :]

    y1 = _e(s2) * x1 + t2

    # [s1; t1] = W_ry @ y1 + b_ry
    st = jnp.dot(wry_ref[...], y1, preferred_element_type=jnp.float32) + bry_ref[...]
    s1 = st[:split2, :]
    t1 = st[split2:, :]

    y2 = _e(s1) * x2 + t1

    # Write the two halves straight into the output slices (no concatenate).
    o_ref[:split1, :] = y1.astype(o_ref.dtype)
    o_ref[split1:, :] = y2.astype(o_ref.dtype)


def inv_block_affine(x_nchw, params, *, tile_rows=8192):
    """x_nchw: (N, C, H, W) with C = SPLIT1 + SPLIT2."""
    N, C, H, W = x_nchw.shape
    assert C == C_TOTAL
    hw = H * W

    # Tile sizing: large lane-dense tiles (48 x 8192 f32 = 1.5 MiB), clipped to
    # the (128-rounded) per-image pixel count, always a multiple of 128 lanes.
    tile_rows = min(tile_rows, pl.cdiv(hw, 128) * 128)
    tile_rows = max(128, (tile_rows // 128) * 128)
    hw_p = pl.cdiv(hw, tile_rows) * tile_rows

    # NCHW -> (N, C, H*W): a pure reshape, no data movement.  Grid iterates
    # over the batch axis, so no channels/batch transpose is ever needed.
    x3d = x_nchw.reshape(N, C, hw)
    if hw_p != hw:
        x3d = jnp.pad(x3d, ((0, 0), (0, 0), (0, hw_p - hw)))

    (wf, bf), (wp, bp), (wr, br), (wy, by) = (
        params["f"], params["p"], params["r"], params["y"])

    # Fuse weight pairs and move to channels-major (out-channels on sublanes).
    wfp = jnp.concatenate([wf.T, wp.T], axis=0)   # (2*split1, split2)
    bfp = jnp.concatenate([bf.T, bp.T], axis=0)   # (2*split1, 1)
    wry = jnp.concatenate([wr.T, wy.T], axis=0)   # (2*split2, split1)
    bry = jnp.concatenate([br.T, by.T], axis=0)   # (2*split2, 1)

    kern = functools.partial(inv_block_kernel, split1=SPLIT1, split2=SPLIT2)
    full = lambda a: pl.BlockSpec(a.shape, lambda n, i: (0, 0))  # grid-invariant

    x_spec = pl.BlockSpec((None, C, tile_rows), lambda n, i: (n, 0, i))

    out3d = pl.pallas_call(
        kern,
        out_shape=jax.ShapeDtypeStruct((N, C, hw_p), x3d.dtype),
        grid_spec=pltpu.PrefetchScalarGridSpec(
            num_scalar_prefetch=0,
            grid=(N, hw_p // tile_rows),
            in_specs=[
                x_spec,                 # x tile (C, tile_rows)
                full(wfp), full(bfp),
                full(wry), full(bry),
            ],
            out_specs=pl.BlockSpec((None, C, tile_rows), lambda n, i: (n, 0, i)),
        ),
        compiler_params=pltpu.CompilerParams(
            dimension_semantics=("parallel", "parallel")),
    )(x3d, wfp, bfp, wry, bry)

    # (N, C, hw_p) -> NCHW (drop padding; reshape is free)
    return out3d[:, :, :hw].reshape(N, C, H, W)


def make_params(key):
    """Deterministic synthetic weights.  W: (C_in, C_out), b: (1, C_out)."""
    def dense(k, cin, cout):
        kw, kb = jax.random.split(k)
        w = jax.random.normal(kw, (cin, cout), jnp.float32) * 0.1
        b = jax.random.normal(kb, (1, cout), jnp.float32) * 0.01
        return w, b

    kf, kp, kr, ky = jax.random.split(key, 4)
    return {
        "f": dense(kf, SPLIT2, SPLIT1),
        "p": dense(kp, SPLIT2, SPLIT1),
        "r": dense(kr, SPLIT1, SPLIT2),
        "y": dense(ky, SPLIT1, SPLIT2),
    }


def reference(x_nchw, params):
    """Pure-JAX reference of the same forward pass (original sigmoid form)."""
    N, C, H, W = x_nchw.shape
    x2d = jnp.transpose(x_nchw, (0, 2, 3, 1)).reshape(-1, C)
    x1, x2 = x2d[:, :SPLIT1], x2d[:, SPLIT1:]
    (wf, bf), (wp, bp), (wr, br), (wy, by) = (
        params["f"], params["p"], params["r"], params["y"])

    def e(s):
        return jnp.exp(CLAMP * 2.0 * (jax.nn.sigmoid(s) - 0.5))

    t2 = x2 @ wf + bf
    s2 = x2 @ wp + bp
    y1 = e(s2) * x1 + t2
    s1 = y1 @ wr + br
    t1 = y1 @ wy + by
    y2 = e(s1) * x2 + t1
    out = jnp.concatenate([y1, y2], axis=-1)
    return jnp.transpose(out.reshape(N, H, W, C), (0, 3, 1, 2))


if __name__ == "__main__":
    key = jax.random.PRNGKey(0)
    kx, kp = jax.random.split(key)

    N, H, W = 2, 16, 16
    x = jax.random.normal(kx, (N, C_TOTAL, H, W), jnp.float32)
    params = make_params(kp)

    out = inv_block_affine(x, params)
    out = jax.block_until_ready(out)

    ref = reference(x, params)
    assert out.shape == (N, C_TOTAL, H, W)
    assert jnp.allclose(out, ref, atol=1e-4, rtol=1e-4)

    print("KERNEL_OK")
</pallas_src>

<mosaic_0001>
module attributes {stable_mosaic.version = 11 : i64} {
  func.func @inv_block_kernel(%arg0: i32, %arg1: i32, %arg2: memref<1x48x256xf32, #tpu.memory_space<vmem>>, %arg3: memref<48x24xf32, #tpu.memory_space<vmem>>, %arg4: memref<48x1xf32, #tpu.memory_space<vmem>>, %arg5: memref<48x24xf32, #tpu.memory_space<vmem>>, %arg6: memref<48x1xf32, #tpu.memory_space<vmem>>, %arg7: memref<1x48x256xf32, #tpu.memory_space<vmem>>) attributes {dimension_semantics = [#tpu.dimension_semantics<parallel>, #tpu.dimension_semantics<parallel>], iteration_bounds = array<i64: 2, 1>, scalar_prefetch = 0 : i64, scratch_operands = 0 : i64, tpu.core_type = #tpu.core_type<tc>, window_params = [{transform_indices = @transform_0, window_bounds = array<i64: 1, 48, 256>}, {pipeline_mode = #tpu.pipeline_mode<synchronous>, transform_indices = @transform_1, window_bounds = array<i64: 48, 24>}, {pipeline_mode = #tpu.pipeline_mode<synchronous>, transform_indices = @transform_2, window_bounds = array<i64: 48, 1>}, {pipeline_mode = #tpu.pipeline_mode<synchronous>, transform_indices = @transform_3, window_bounds = array<i64: 48, 24>}, {pipeline_mode = #tpu.pipeline_mode<synchronous>, transform_indices = @transform_4, window_bounds = array<i64: 48, 1>}, {transform_indices = @transform_5, window_bounds = array<i64: 1, 48, 256>}]} {
    %c0 = arith.constant 0 : index
    %c0_0 = arith.constant 0 : index
    %c0_1 = arith.constant 0 : index
    %0 = vector.load %arg2[%c0, %c0_0, %c0_1] : memref<1x48x256xf32, #tpu.memory_space<vmem>>, vector<1x24x256xf32>
    %1 = vector.shape_cast %0 : vector<1x24x256xf32> to vector<24x256xf32>
    %c0_2 = arith.constant 0 : index
    %c24 = arith.constant 24 : index
    %c0_3 = arith.constant 0 : index
    %2 = vector.load %arg2[%c0_2, %c24, %c0_3] : memref<1x48x256xf32, #tpu.memory_space<vmem>>, vector<1x24x256xf32>
    %3 = vector.shape_cast %2 : vector<1x24x256xf32> to vector<24x256xf32>
    %c0_4 = arith.constant 0 : index
    %c0_5 = arith.constant 0 : index
    %4 = vector.load %arg3[%c0_4, %c0_5] : memref<48x24xf32, #tpu.memory_space<vmem>>, vector<48x24xf32>
    %cst = arith.constant dense<0.000000e+00> : vector<48x256xf32>
    %5 = tpu.matmul %4, %3, %cst {dimension_numbers = #tpu.dot_dimension_numbers<[1], [0], [0], [1], [0, 0, 1, 1], [], []>} : vector<48x24xf32>, vector<24x256xf32>, vector<48x256xf32> -> vector<48x256xf32>
    %c0_6 = arith.constant 0 : index
    %c0_7 = arith.constant 0 : index
    %6 = vector.load %arg4[%c0_6, %c0_7] : memref<48x1xf32, #tpu.memory_space<vmem>>, vector<48x1xf32>
    %7 = vector.broadcast %6 : vector<48x1xf32> to vector<48x256xf32>
    %8 = arith.addf %5, %7 : vector<48x256xf32>
    %9 = vector.extract_strided_slice %8 {offsets = [0, 0], sizes = [24, 256], strides = [1, 1]} : vector<48x256xf32> to vector<24x256xf32>
    %10 = vector.extract_strided_slice %8 {offsets = [24, 0], sizes = [24, 256], strides = [1, 1]} : vector<48x256xf32> to vector<24x256xf32>
    %cst_8 = arith.constant 5.000000e-01 : f32
    %11 = vector.broadcast %cst_8 : f32 to vector<24x256xf32>
    %12 = arith.mulf %11, %10 : vector<24x256xf32>
    %13 = math.tanh %12 : vector<24x256xf32>
    %cst_9 = arith.constant 2.000000e+00 : f32
    %14 = vector.broadcast %cst_9 : f32 to vector<24x256xf32>
    %15 = arith.mulf %14, %13 : vector<24x256xf32>
    %16 = math.exp %15 : vector<24x256xf32>
    %17 = arith.mulf %16, %1 : vector<24x256xf32>
    %18 = arith.addf %17, %9 : vector<24x256xf32>
    %c0_10 = arith.constant 0 : index
    %c0_11 = arith.constant 0 : index
    %19 = vector.load %arg5[%c0_10, %c0_11] : memref<48x24xf32, #tpu.memory_space<vmem>>, vector<48x24xf32>
    %cst_12 = arith.constant dense<0.000000e+00> : vector<48x256xf32>
    %20 = tpu.matmul %19, %18, %cst_12 {dimension_numbers = #tpu.dot_dimension_numbers<[1], [0], [0], [1], [0, 0, 1, 1], [], []>} : vector<48x24xf32>, vector<24x256xf32>, vector<48x256xf32> -> vector<48x256xf32>
    %c0_13 = arith.constant 0 : index
    %c0_14 = arith.constant 0 : index
    %21 = vector.load %arg6[%c0_13, %c0_14] : memref<48x1xf32, #tpu.memory_space<vmem>>, vector<48x1xf32>
    %22 = vector.broadcast %21 : vector<48x1xf32> to vector<48x256xf32>
    %23 = arith.addf %20, %22 : vector<48x256xf32>
    %24 = vector.extract_strided_slice %23 {offsets = [0, 0], sizes = [24, 256], strides = [1, 1]} : vector<48x256xf32> to vector<24x256xf32>
    %25 = vector.extract_strided_slice %23 {offsets = [24, 0], sizes = [24, 256], strides = [1, 1]} : vector<48x256xf32> to vector<24x256xf32>
    %cst_15 = arith.constant 5.000000e-01 : f32
    %26 = vector.broadcast %cst_15 : f32 to vector<24x256xf32>
    %27 = arith.mulf %26, %24 : vector<24x256xf32>
    %28 = math.tanh %27 : vector<24x256xf32>
    %cst_16 = arith.constant 2.000000e+00 : f32
    %29 = vector.broadcast %cst_16 : f32 to vector<24x256xf32>
    %30 = arith.mulf %29, %28 : vector<24x256xf32>
    %31 = math.exp %30 : vector<24x256xf32>
    %32 = arith.mulf %31, %3 : vector<24x256xf32>
    %33 = arith.addf %32, %25 : vector<24x256xf32>
    %c0_17 = arith.constant 0 : index
    %c0_18 = arith.constant 0 : index
    %c0_19 = arith.constant 0 : index
    %34 = vector.load %arg7[%c0_17, %c0_18, %c0_19] : memref<1x48x256xf32, #tpu.memory_space<vmem>>, vector<1x24x256xf32>
    %35 = vector.shape_cast %34 : vector<1x24x256xf32> to vector<24x256xf32>
    %36 = vector.shape_cast %18 : vector<24x256xf32> to vector<1x24x256xf32>
    tpu.vector_store %arg7[%c0_17, %c0_18, %c0_19], %36 {strides = array<i32>} : memref<1x48x256xf32, #tpu.memory_space<vmem>>, vector<1x24x256xf32>,
    %c0_20 = arith.constant 0 : index
    %c24_21 = arith.constant 24 : index
    %c0_22 = arith.constant 0 : index
    %37 = vector.load %arg7[%c0_20, %c24_21, %c0_22] : memref<1x48x256xf32, #tpu.memory_space<vmem>>, vector<1x24x256xf32>
    %38 = vector.shape_cast %37 : vector<1x24x256xf32> to vector<24x256xf32>
    %39 = vector.shape_cast %33 : vector<24x256xf32> to vector<1x24x256xf32>
    tpu.vector_store %arg7[%c0_20, %c24_21, %c0_22], %39 {strides = array<i32>} : memref<1x48x256xf32, #tpu.memory_space<vmem>>, vector<1x24x256xf32>,
    return
  }
  func.func @transform_0(%arg0: i32, %arg1: i32) -> (i32, i32, i32) {
    %c0_i32 = arith.constant 0 : i32
    %c0_i32_0 = arith.constant 0 : i32
    return %arg0, %c0_i32, %arg1 : i32, i32, i32
  }
  func.func @transform_1(%arg0: i32, %arg1: i32) -> (i32, i32) {
    %c0_i32 = arith.constant 0 : i32
    %c0_i32_0 = arith.constant 0 : i32
    %c0_i32_1 = arith.constant 0 : i32
    return %c0_i32, %c0_i32_0 : i32, i32
  }
  func.func @transform_2(%arg0: i32, %arg1: i32) -> (i32, i32) {
    %c0_i32 = arith.constant 0 : i32
    %c0_i32_0 = arith.constant 0 : i32
    %c0_i32_1 = arith.constant 0 : i32
    return %c0_i32, %c0_i32_0 : i32, i32
  }
  func.func @transform_3(%arg0: i32, %arg1: i32) -> (i32, i32) {
    %c0_i32 = arith.constant 0 : i32
    %c0_i32_0 = arith.constant 0 : i32
    %c0_i32_1 = arith.constant 0 : i32
    return %c0_i32, %c0_i32_0 : i32, i32
  }
  func.func @transform_4(%arg0: i32, %arg1: i32) -> (i32, i32) {
    %c0_i32 = arith.constant 0 : i32
    %c0_i32_0 = arith.constant 0 : i32
    %c0_i32_1 = arith.constant 0 : i32
    return %c0_i32, %c0_i32_0 : i32, i32
  }
  func.func @transform_5(%arg0: i32, %arg1: i32) -> (i32, i32, i32) {
    %c0_i32 = arith.constant 0 : i32
    %c0_i32_0 = arith.constant 0 : i32
    return %arg0, %c0_i32, %arg1 : i32, i32, i32
  }
}

</mosaic_0001>

<llo_original>
// kernel: tpu_custom_call.1
$region0: #{tpu_custom_call.1}
  #allocation0 [shape = 'u32[]', space=smem, size = 0x4, offset = 0x4, fixed_abs, tag = 'smem constant byte address 0x4 - core index']
  #allocation1 [shape = 'u32[144,128]{1,0:T(1,128)}', space=vmem, size = 0x12000, scoped, tag = 'internal scratch']
  %s0 = inlined_call_operand.vmem [shape: f32[2,48,256], index: 0, kind: input, shape index: {}]
  %s1 = inlined_call_operand.vmem [shape: f32[48,24], index: 1, kind: input, shape index: {}]
  %s2 = inlined_call_operand.vmem [shape: f32[48,1], index: 2, kind: input, shape index: {}]
  %s3 = inlined_call_operand.vmem [shape: f32[48,24], index: 3, kind: input, shape index: {}]
  %s4 = inlined_call_operand.vmem [shape: f32[48,1], index: 4, kind: input, shape index: {}]
  %s5 = inlined_call_operand.hbm [shape: f32[2,48,256], index: 5, kind: output, shape index: {}]
  %s6 = sld [smem:[#allocation0]]
  $region53: #{tpu_custom_call.1} parent=0
    _
  %s8 = ssub.s32 1, %s6
  %s9 = scalar_select 0, %s8, %s6
  $region1: #{tpu_custom_call.1} parent=0
    #allocation2 [shape = 'u8[98304]{0}', space=vmem, size = 0x18000, scoped, tag = 'output window, operand 0']
    #allocation3 [shape = 's32[2]{0}', space=sflag, size = 0x8, scoped, tag = 'scoped memory for tpu_custom_call.1']
    %10 = vsyncpa [#allocation3], 0
    %s11 = scalar_lea.sflag [#allocation3], 1
    %12 = vsyncpa %s11, 0
    loop: start=0, step=1, limit=4
    $region2: #{tpu_custom_call.1} parent=1 // loop_pre_header
      _
    $region3: #{tpu_custom_call.1} parent=1 // loop_header
      %s14 = sphi 0, %s18
      %p15 = scmp.ge.s32.totalorder %s14, 4
      %s21 = sphi 0, %s33
      %s22 = sphi 0, %s29
      %s23 = sphi 0, %s21
      %s24 = sphi 0, %s22
      %s25 = sphi 0, %s23
      %s26 = sphi 0, %s24
      %s38 = sphi 0, %s40
      %s41 = sphi 0, %s38
      %s42 = sphi 0, %s41
      %s58 = sphi 0, %s42
      %s62 = sphi 0, %s62
      %s64 = sphi 0, %s62
      %s65 = sphi 0, %s64
      %s79 = sphi 0, %s65
      %s83 = sphi 0, %s83
      %s85 = sphi 0, %s83
      %s86 = sphi 0, %s85
      %s100 = sphi 0, %s86
      %s104 = sphi 0, %s104
      %s106 = sphi 0, %s104
      %s107 = sphi 0, %s106
      %s121 = sphi 0, %s107
      %s125 = sphi 0, %s125
      %s127 = sphi 0, %s125
      %s128 = sphi 0, %s127
      %s142 = sphi 0, %s128
      %s150 = sphi 0, %s152
      %s153 = sphi 0, %s150
      %s154 = sphi 0, %s153
      %s170 = sphi 0, %s154
    $region4: #{tpu_custom_call.1} parent=1 // loop_header_branch
      %17 = sbr.rel (%p15) target = $region8
    $region5: #{tpu_custom_call.1} parent=1 // loop_body
      %s19 = ssub.s32 %s14, 1
      %s20 = ssub.s32 %s14, 2
      %s27 = sadd.s32 1, %s22
      %p28 = scmp.ge.s32.totalorder %s27, 1
      %s29 = scalar_select %p28, 0, %s27
      %s30 = sadd.s32 1, %s21
      %s31 = scalar_select %p28, %s30, %s21
      %p32 = scmp.ge.s32.totalorder %s31, 2
      %s33 = scalar_select %p32, 0, %s31
      %s34 = ssub.s32 %s21, %s33
      %s35 = ssub.s32 %s22, %s29
      %s36 = sor.u32 %s34, %s35
      %p37 = scmp.eq.s32.totalorder %s36, 0
      %s39 = sadd.s32 %s38, 1
      %s40 = scalar_select %p37, %s38, %s39
      %p43 = pneg %p37
      %p44 = scmp.eq.s32.totalorder %s14, 1
      %p45 = por %p43, %p44
      %p46 = scmp.ne.s32.totalorder %s38, %s41
      %p47 = scmp.eq.s32.totalorder %s14, 0
      %p48 = por %p46, %p47
      %p49 = scmp.ne.s32.totalorder %s38, %s41
      %p50 = scmp.eq.s32.totalorder %s19, 1
      %p51 = por %p49, %p50
      %p52 = scmp.ne.s32.totalorder %s41, %s42
      %p53 = scmp.eq.s32.totalorder %s19, 0
      %p54 = por %p52, %p53
      %p55 = scmp.ne.s32.totalorder %s41, %s42
      %p56 = scmp.eq.s32.totalorder %s20, 1
      %p57 = por %p55, %p56
      %p59 = scmp.ne.s32.totalorder %s42, %s58
      %p60 = scmp.eq.s32.totalorder %s20, 0
      %p61 = por %p59, %p60
      %s63 = sadd.s32 %s62, 1
      %p66 = scmp.eq.s32.totalorder %s14, 1
      %p67 = scmp.ne.s32.totalorder %s62, %s64
      %p68 = scmp.eq.s32.totalorder %s14, 0
      %p69 = por %p67, %p68
      %p70 = scmp.ne.s32.totalorder %s62, %s64
      %p71 = scmp.eq.s32.totalorder %s19, 1
      %p72 = por %p70, %p71
      %p73 = scmp.ne.s32.totalorder %s64, %s65
      %p74 = scmp.eq.s32.totalorder %s19, 0
      %p75 = por %p73, %p74
      %p76 = scmp.ne.s32.totalorder %s64, %s65
      %p77 = scmp.eq.s32.totalorder %s20, 1
      %p78 = por %p76, %p77
      %p80 = scmp.ne.s32.totalorder %s65, %s79
      %p81 = scmp.eq.s32.totalorder %s20, 0
      %p82 = por %p80, %p81
      %s84 = sadd.s32 %s83, 1
      %p87 = scmp.eq.s32.totalorder %s14, 1
      %p88 = scmp.ne.s32.totalorder %s83, %s85
      %p89 = scmp.eq.s32.totalorder %s14, 0
      %p90 = por %p88, %p89
      %p91 = scmp.ne.s32.totalorder %s83, %s85
      %p92 = scmp.eq.s32.totalorder %s19, 1
      %p93 = por %p91, %p92
      %p94 = scmp.ne.s32.totalorder %s85, %s86
      %p95 = scmp.eq.s32.totalorder %s19, 0
      %p96 = por %p94, %p95
      %p97 = scmp.ne.s32.totalorder %s85, %s86
      %p98 = scmp.eq.s32.totalorder %s20, 1
      %p99 = por %p97, %p98
      %p101 = scmp.ne.s32.totalorder %s86, %s100
      %p102 = scmp.eq.s32.totalorder %s20, 0
      %p103 = por %p101, %p102
      %s105 = sadd.s32 %s104, 1
      %p108 = scmp.eq.s32.totalorder %s14, 1
      %p109 = scmp.ne.s32.totalorder %s104, %s106
      %p110 = scmp.eq.s32.totalorder %s14, 0
      %p111 = por %p109, %p110
      %p112 = scmp.ne.s32.totalorder %s104, %s106
      %p113 = scmp.eq.s32.totalorder %s19, 1
      %p114 = por %p112, %p113
      %p115 = scmp.ne.s32.totalorder %s106, %s107
      %p116 = scmp.eq.s32.totalorder %s19, 0
      %p117 = por %p115, %p116
      %p118 = scmp.ne.s32.totalorder %s106, %s107
      %p119 = scmp.eq.s32.totalorder %s20, 1
      %p120 = por %p118, %p119
      %p122 = scmp.ne.s32.totalorder %s107, %s121
      %p123 = scmp.eq.s32.totalorder %s20, 0
      %p124 = por %p122, %p123
      %s126 = sadd.s32 %s125, 1
      %p129 = scmp.eq.s32.totalorder %s14, 1
      %p130 = scmp.ne.s32.totalorder %s125, %s127
      %p131 = scmp.eq.s32.totalorder %s14, 0
      %p132 = por %p130, %p131
      %p133 = scmp.ne.s32.totalorder %s125, %s127
      %p134 = scmp.eq.s32.totalorder %s19, 1
      %p135 = por %p133, %p134
      %p136 = scmp.ne.s32.totalorder %s127, %s128
      %p137 = scmp.eq.s32.totalorder %s19, 0
      %p138 = por %p136, %p137
      %p139 = scmp.ne.s32.totalorder %s127, %s128
      %p140 = scmp.eq.s32.totalorder %s20, 1
      %p141 = por %p139, %p140
      %p143 = scmp.ne.s32.totalorder %s128, %s142
      %p144 = scmp.eq.s32.totalorder %s20, 0
      %p145 = por %p143, %p144
      %s146 = ssub.s32 %s21, %s33
      %s147 = ssub.s32 %s22, %s29
      %s148 = sor.u32 %s146, %s147
      %p149 = scmp.eq.s32.totalorder %s148, 0
      %s151 = sadd.s32 %s150, 1
      %s152 = scalar_select %p149, %s150, %s151
      %p155 = pneg %p149
      %p156 = scmp.eq.s32.totalorder %s14, 1
      %p157 = por %p155, %p156
      %p158 = scmp.ne.s32.totalorder %s150, %s153
      %p159 = scmp.eq.s32.totalorder %s14, 0
      %p160 = por %p158, %p159
      %p161 = scmp.ne.s32.totalorder %s150, %s153
      %p162 = scmp.eq.s32.totalorder %s19, 1
      %p163 = por %p161, %p162
      %p164 = scmp.ne.s32.totalorder %s153, %s154
      %p165 = scmp.eq.s32.totalorder %s19, 0
      %p166 = por %p164, %p165
      %p167 = scmp.ne.s32.totalorder %s153, %s154
      %p168 = scmp.eq.s32.totalorder %s20, 1
      %p169 = por %p167, %p168
      %p171 = scmp.ne.s32.totalorder %s154, %s170
      %p172 = scmp.eq.s32.totalorder %s20, 0
      %p173 = por %p171, %p172
      %p174 = scmp.le.s32.totalorder 1, %s14
      %p175 = scmp.lt.s32.totalorder %s14, 3
      %p176 = pnand %p174, %p175
      %p177 = pneg %p176
      // Predicated region
      $region9: #{tpu_custom_call.1} parent=5 // pred_check
        _
      $region10: #{tpu_custom_call.1} parent=5 // pred_check_branch
        %179 = sbr.rel (%p176) target = $region12
      $region11: #{tpu_custom_call.1} parent=5 // pred_region
        %s180 = ssub.s32 %s14, 1
        // Predicated region
        $region13: #{tpu_custom_call.1} parent=11 // pred_check
          %p181 = pneg %p75
        $region14: #{tpu_custom_call.1} parent=11 // pred_check_branch
          %183 = sbr.rel (%p181) target = $region16
        $region15: #{tpu_custom_call.1} parent=11 // pred_region
          _
        $region16: #{tpu_custom_call.1} parent=11 // pred_fallthru
          _
        // Predicated region
        $region17: #{tpu_custom_call.1} parent=11 // pred_check
          %p184 = pneg %p96
        $region18: #{tpu_custom_call.1} parent=11 // pred_check_branch
          %186 = sbr.rel (%p184) target = $region20
        $region19: #{tpu_custom_call.1} parent=11 // pred_region
          _
        $region20: #{tpu_custom_call.1} parent=11 // pred_fallthru
          _
        // Predicated region
        $region21: #{tpu_custom_call.1} parent=11 // pred_check
          %p187 = pneg %p117
        $region22: #{tpu_custom_call.1} parent=11 // pred_check_branch
          %189 = sbr.rel (%p187) target = $region24
        $region23: #{tpu_custom_call.1} parent=11 // pred_region
          _
        $region24: #{tpu_custom_call.1} parent=11 // pred_fallthru
          _
        // Predicated region
        $region25: #{tpu_custom_call.1} parent=11 // pred_check
          %p190 = pneg %p138
        $region26: #{tpu_custom_call.1} parent=11 // pred_check_branch
          %192 = sbr.rel (%p190) target = $region28
        $region27: #{tpu_custom_call.1} parent=11 // pred_region
          _
        $region28: #{tpu_custom_call.1} parent=11 // pred_fallthru
          _
      $region12: #{tpu_custom_call.1} parent=5 // pred_fallthru
        _
      %p193 = scmp.lt.s32.totalorder %s14, 2
      // Predicated region
      $region29: #{tpu_custom_call.1} parent=5 // pred_check
        %p194 = pneg %p193
      $region30: #{tpu_custom_call.1} parent=5 // pred_check_branch
        %196 = sbr.rel (%p194) target = $region32
      $region31: #{tpu_custom_call.1} parent=5 // pred_region
        // Predicated region
        $region33: #{tpu_custom_call.1} parent=31 // pred_check
          %p197 = pneg %p48
        $region34: #{tpu_custom_call.1} parent=31 // pred_check_branch
          %199 = sbr.rel (%p197) target = $region36
        $region35: #{tpu_custom_call.1} parent=31 // pred_region
          %s200 = smul.u32 2, %s22
          %p201 = scmp.lt.s32.totalorder %s21, 1
          %s202 = scalar_select %p201, %s21, 1
          %p203 = scmp.lt.s32.totalorder %s200, 1
          %s204 = scalar_select %p203, %s200, 1
          %s205 = smul.addr %s202, 12
          %s206 = sadd.s32 %s204, %s205
          %s207 = smul.addr %s206, 8
          %s208 = scalar_lea.vmem %s0, %s207
          %s209 = smul.u32 2, %s22
        $region36: #{tpu_custom_call.1} parent=31 // pred_fallthru
          _
      $region32: #{tpu_custom_call.1} parent=5 // pred_fallthru
        _
      %p210 = scmp.le.s32.totalorder 1, %s14
      %p211 = scmp.lt.s32.totalorder %s14, 3
      %p212 = pnand %p210, %p211
      %p213 = pneg %p212
      // Predicated region
      $region37: #{tpu_custom_call.1} parent=5 // pred_check
        _
      $region38: #{tpu_custom_call.1} parent=5 // pred_check_branch
        %215 = sbr.rel (%p212) target = $region40
      $region39: #{tpu_custom_call.1} parent=5 // pred_region
        %s216 = ssub.s32 %s14, 1
        %s217 = smul.u32 2, %s24
        %p218 = scmp.lt.s32.totalorder %s23, 1
        %s219 = scalar_select %p218, %s23, 1
        %p220 = scmp.lt.s32.totalorder %s217, 1
        %s221 = scalar_select %p220, %s217, 1
        %s222 = smul.addr %s219, 12
        %s223 = sadd.s32 %s221, %s222
        %s224 = smul.addr %s223, 8
        %s225 = scalar_lea.vmem %s0, %s224
        %p226 = pneg %p54
        %p227 = pneg %p51
        %p228 = pneg %p75
        %p229 = pneg %p72
        %p230 = pneg %p96
        %p231 = pneg %p93
        %p232 = pneg %p117
        %p233 = pneg %p114
        %p234 = pneg %p138
        %p235 = pneg %p135
        %p236 = pneg %p166
        %p237 = pneg %p163
        %s238 = sand.u32 %s153, 1
        %s239 = scalar_lea.sflag [#allocation3], %s238
        %s240 = sand.u32 %s153, 1
        %s241 = smul.addr %s240, 96
        %s242 = scalar_lea.vmem [#allocation2], %s241
        %s243 = smul.u32 2, %s24
        %p244 = scmp.lt.s32.totalorder %s23, 1
        %s245 = scalar_select %p244, %s23, 1
        %p246 = scmp.lt.s32.totalorder %s243, 1
        %s247 = scalar_select %p246, %s243, 1
        %s248 = smul.addr %s245, 12
        %s249 = sadd.s32 %s247, %s248
        %s250 = smul.addr %s249, 8
        %s251 = scalar_lea.vmem %s0, %s250
        %s252 = smul.u32 2, %s24
        %s253 = smul.u32 2, %s24
        %v254 = vld [vmem:[%s251] sm:$0xff]
        %v255 = vld [vmem:[%s251 + $0x8] sm:$0xff]
        %v256 = vld [vmem:[%s251 + $0x10] sm:$0xff]
        %v257 = vld [vmem:[%s251 + $0x18] sm:$0xff]
        %v258 = vld [vmem:[%s251 + $0x20] sm:$0xff]
        %v259 = vld [vmem:[%s251 + $0x28] sm:$0xff]
        %v260 = vld [vmem:[%s251 + $0x30] sm:$0xff]
        %v261 = vld [vmem:[%s251 + $0x38] sm:$0xff]
        %v262 = vld [vmem:[%s251 + $0x40] sm:$0xff]
        %v263 = vld [vmem:[%s251 + $0x48] sm:$0xff]
        %v264 = vld [vmem:[%s251 + $0x50] sm:$0xff]
        %v265 = vld [vmem:[%s251 + $0x58] sm:$0xff]
        %v266 = vld [vmem:[%s1] sm:$0xff]
        %v267 = vld [vmem:[%s1 + $0x8] sm:$0xff]
        %v268 = vld [vmem:[%s1 + $0x10] sm:$0xff]
        %v269 = vld [vmem:[%s1 + $0x18] sm:$0xff]
        %v270 = vld [vmem:[%s1 + $0x20] sm:$0xff]
        %v271 = vld [vmem:[%s1 + $0x28] sm:$0xff]
        %v272 = vld [vmem:[%s2] sm:$0xff]
        %v273 = vld [vmem:[%s2 + $0x8] sm:$0xff]
        %v274 = vld [vmem:[%s2 + $0x10] sm:$0xff]
        %v275 = vld [vmem:[%s2 + $0x18] sm:$0xff]
        %v276 = vld [vmem:[%s2 + $0x20] sm:$0xff]
        %v277 = vld [vmem:[%s2 + $0x28] sm:$0xff]
        %279 = vset.pattern.permute.xlu0 0
        %280 = vperm.xlu0 %279, %v272
        %v281 = vpop.permute.xlu0 %280
        %284 = vset.pattern.permute.xlu0 0
        %285 = vperm.xlu0 %284, %v273
        %v286 = vpop.permute.xlu0 %285
        %289 = vset.pattern.permute.xlu0 0
        %290 = vperm.xlu0 %289, %v274
        %v291 = vpop.permute.xlu0 %290
        %294 = vset.pattern.permute.xlu0 0
        %295 = vperm.xlu0 %294, %v275
        %v296 = vpop.permute.xlu0 %295
        %299 = vset.pattern.permute.xlu0 0
        %300 = vperm.xlu0 %299, %v276
        %v301 = vpop.permute.xlu0 %300
        %304 = vset.pattern.permute.xlu0 0
        %305 = vperm.xlu0 %304, %v277
        %v306 = vpop.permute.xlu0 %305
        %vm308 = vcmask 195584
        %v310 = vsel %vm308, %v266, 0
        %v313 = vsel %vm308, %v267, 0
        %v316 = vsel %vm308, %v268, 0
        %v319 = vsel %vm308, %v269, 0
        %v322 = vsel %vm308, %v270, 0
        %v325 = vsel %vm308, %v271, 0
        %327 = vmatprep.subr.mxu0 %v261
        %328 = vmatpush1.msra.mxu0 %v260
        %329 = vmatprep.subr.mxu0 %v263
        %330 = vmatpush1.msra.mxu0 %v262
        %331 = vmatprep.subr.mxu0 %v265
        %332 = vmatpush1.msra.mxu0 %v264
        %333 = vmatprep.subr.mxu0 0.0
        %334 = vmatpush1.msra.mxu0 0.0
        %335 = vmatprep.subr.mxu0 0.0
        %336 = vmatpush1.msra.mxu0 0.0
        %337 = vmatprep.subr.mxu0 0.0
        %338 = vmatpush1.msra.mxu0 0.0
        %339 = vmatprep.subr.mxu0 0.0
        %340 = vmatpush1.msra.mxu0 0.0
        %341 = vmatprep.subr.mxu0 0.0
        %342 = vmatpush1.msra.mxu0 0.0
        %343 = vmatprep.subr.mxu0 0.0
        %344 = vmatpush1.msra.mxu0 0.0
        %345 = vmatprep.subr.mxu0 0.0
        %346 = vmatpush1.msra.mxu0 0.0
        %347 = vmatprep.subr.mxu0 0.0
        %348 = vmatpush1.msra.mxu0 0.0
        %349 = vmatprep.subr.mxu0 0.0
        %350 = vmatpush1.msra.mxu0 0.0
        %351 = vmatprep.subr.mxu0 0.0
        %352 = vmatpush1.msra.mxu0 0.0
        %353 = vmatprep.subr.mxu0 0.0
        %354 = vmatpush1.msra.mxu0 0.0
        %355 = vmatprep.subr.mxu0 0.0
        %356 = vmatpush1.msra.mxu0 0.0
        %357 = vmatprep.subr.mxu0 0.0
        %358 = vmatpush1.msra.mxu0 0.0
        %359 = vmatprep.subr.mxu0 0.0
        %360 = vmatpush1.msra.mxu0 0.0
        %361 = vmatprep.subr.mxu0 0.0
        %362 = vmatpush1.msra.mxu0 0.0
        %363 = vmatprep.subr.mxu0 0.0
        %364 = vmatpush1.msra.mxu0 0.0
        %365 = vmatprep.subr.mxu0 0.0
        %366 = vmatpush1.msra.mxu0 0.0
        %367 = vmatprep.subr.mxu0 0.0
        %368 = vmatpush1.msra.mxu0 0.0
        %369 = vmatprep.subr.mxu0 0.0
        %370 = vmatpush1.msra.mxu0 0.0
        %371 = vmatprep.subr.mxu0 0.0
        %372 = vmatpush1.msra.mxu0 0.0
        %373 = vmatprep.subr.mxu0 0.0
        %374 = vmatpush1.msra.mxu0 0.0
        %375 = vmatprep.subr.mxu0 0.0
        %376 = vmatpush1.msra.mxu0 0.0
        %377 = vmatprep.subr.mxu0 0.0
        %378 = vmatpush1.msra.mxu0 0.0
        %379 = vmatprep.subr.mxu0 0.0
        %380 = vmatpush1.msra.mxu0 0.0
        %381 = vmatprep.subr.mxu0 0.0
        %382 = vmatpush1.msra.mxu0 0.0
        %383 = vmatprep.subr.mxu0 0.0
        %384 = vmatpush1.msra.mxu0 0.0
        %385 = vmatprep.subr.mxu0 0.0
        %386 = vmatpush1.msra.mxu0 0.0
        %387 = vmatprep.subr.mxu0 0.0
        %388 = vmatpush1.msra.mxu0 0.0
        %389 = vmatprep.subr.mxu0 0.0
        %390 = vmatpush1.msra.mxu0 0.0
        %391 = vmatprep.mubr.f32.mxu0 0.0
        %392 = vmatmul.mubr.f32.gmra.mrb[0].mxu0 %v310
        %v393 = vpop.f32.mrb[0].mxu0
        %v394 = vadd.f32 %v281, %v393
        %v395 = vpop.f32.mrb[0].mxu0
        %v396 = vadd.f32 %v281, %v395
        %397 = vmatprep.mubr.f32.mxu0 0.0
        %398 = vmatmul.mubr.f32.gmra.mrb[0].mxu0 %v313
        %v399 = vpop.f32.mrb[0].mxu0
        %v400 = vadd.f32 %v286, %v399
        %v401 = vpop.f32.mrb[0].mxu0
        %v402 = vadd.f32 %v286, %v401
        %403 = vmatprep.mubr.f32.mxu0 0.0
        %404 = vmatmul.mubr.f32.gmra.mrb[0].mxu0 %v316
        %v405 = vpop.f32.mrb[0].mxu0
        %v406 = vadd.f32 %v291, %v405
        %v407 = vpop.f32.mrb[0].mxu0
        %v408 = vadd.f32 %v291, %v407
        %409 = vmatprep.mubr.f32.mxu0 0.0
        %410 = vmatmul.mubr.f32.gmra.mrb[0].mxu0 %v319
        %v411 = vpop.f32.mrb[0].mxu0
        %v412 = vadd.f32 %v296, %v411
        %v413 = vpop.f32.mrb[0].mxu0
        %v414 = vadd.f32 %v296, %v413
        %415 = vmatprep.mubr.f32.mxu0 0.0
        %416 = vmatmul.mubr.f32.gmra.mrb[0].mxu0 %v322
        %v417 = vpop.f32.mrb[0].mxu0
        %v418 = vadd.f32 %v301, %v417
        %v419 = vpop.f32.mrb[0].mxu0
        %v420 = vadd.f32 %v301, %v419
        %421 = vmatprep.mubr.f32.mxu0 0.0
        %422 = vmatmul.mubr.f32.gmra.mrb[0].mxu0 %v325
        %v423 = vpop.f32.mrb[0].mxu0
        %v424 = vadd.f32 %v306, %v423
        %v425 = vpop.f32.mrb[0].mxu0
        %v426 = vadd.f32 %v306, %v425
        %427 = vdwg.mxu0
        %v428 = vmul.f32 %v412, 0.5
        %v429 = vmul.f32 %v414, 0.5
        %v430 = vmul.f32 %v418, 0.5
        %v431 = vmul.f32 %v420, 0.5
        %v432 = vmul.f32 %v424, 0.5
        %v433 = vmul.f32 %v426, 0.5
        %v434 = vtanh.pop %v428
        %v435 = vtanh.pop %v429
        %v436 = vtanh.pop %v430
        %v437 = vtanh.pop %v431
        %v438 = vtanh.pop %v432
        %v439 = vtanh.pop %v433
        %v440 = vmul.f32 %v434, 2.0
        %v441 = vmul.f32 %v435, 2.0
        %v442 = vmul.f32 %v436, 2.0
        %v443 = vmul.f32 %v437, 2.0
        %v444 = vmul.f32 %v438, 2.0
        %v445 = vmul.f32 %v439, 2.0
        %v446 = vmul.f32 %v440, 1.442695
        %v447 = vpow.pop %v446
        %v448 = vmul.f32 %v441, 1.442695
        %v449 = vpow.pop %v448
        %v450 = vmul.f32 %v442, 1.442695
        %v451 = vpow.pop %v450
        %v452 = vmul.f32 %v443, 1.442695
        %v453 = vpow.pop %v452
        %v454 = vmul.f32 %v444, 1.442695
        %v455 = vpow.pop %v454
        %v456 = vmul.f32 %v445, 1.442695
        %v457 = vpow.pop %v456
        %v458 = vmul.f32 %v447, %v254
        %v459 = vmul.f32 %v449, %v255
        %v460 = vmul.f32 %v451, %v256
        %v461 = vmul.f32 %v453, %v257
        %v462 = vmul.f32 %v455, %v258
        %v463 = vmul.f32 %v457, %v259
        %v464 = vadd.f32 %v458, %v394
        %v465 = vadd.f32 %v459, %v396
        %v466 = vadd.f32 %v460, %v400
        %v467 = vadd.f32 %v461, %v402
        %v468 = vadd.f32 %v462, %v406
        %v469 = vadd.f32 %v463, %v408
        %v470 = vld [vmem:[%s3] sm:$0xff]
        %v471 = vld [vmem:[%s3 + $0x8] sm:$0xff]
        %v472 = vld [vmem:[%s3 + $0x10] sm:$0xff]
        %v473 = vld [vmem:[%s3 + $0x18] sm:$0xff]
        %v474 = vld [vmem:[%s3 + $0x20] sm:$0xff]
        %v475 = vld [vmem:[%s3 + $0x28] sm:$0xff]
        %v476 = vld [vmem:[%s4] sm:$0xff]
        %v477 = vld [vmem:[%s4 + $0x8] sm:$0xff]
        %v478 = vld [vmem:[%s4 + $0x10] sm:$0xff]
        %v479 = vld [vmem:[%s4 + $0x18] sm:$0xff]
        %v480 = vld [vmem:[%s4 + $0x20] sm:$0xff]
        %v481 = vld [vmem:[%s4 + $0x28] sm:$0xff]
        %483 = vset.pattern.permute.xlu0 0
        %484 = vperm.xlu0 %483, %v476
        %v485 = vpop.permute.xlu0 %484
        %488 = vset.pattern.permute.xlu0 0
        %489 = vperm.xlu0 %488, %v477
        %v490 = vpop.permute.xlu0 %489
        %493 = vset.pattern.permute.xlu0 0
        %494 = vperm.xlu0 %493, %v478
        %v495 = vpop.permute.xlu0 %494
        %498 = vset.pattern.permute.xlu0 0
        %499 = vperm.xlu0 %498, %v479
        %v500 = vpop.permute.xlu0 %499
        %503 = vset.pattern.permute.xlu0 0
        %504 = vperm.xlu0 %503, %v480
        %v505 = vpop.permute.xlu0 %504
        %508 = vset.pattern.permute.xlu0 0
        %509 = vperm.xlu0 %508, %v481
        %v510 = vpop.permute.xlu0 %509
        %v513 = vsel %vm308, %v470, 0
        %v516 = vsel %vm308, %v471, 0
        %v519 = vsel %vm308, %v472, 0
        %v522 = vsel %vm308, %v473, 0
        %v525 = vsel %vm308, %v474, 0
        %v528 = vsel %vm308, %v475, 0
        %530 = vmatprep.subr.mxu0 %v465
        %531 = vmatpush1.msra.mxu0 %v464
        %532 = vmatprep.subr.mxu0 %v467
        %533 = vmatpush1.msra.mxu0 %v466
        %534 = vmatprep.subr.mxu0 %v469
        %535 = vmatpush1.msra.mxu0 %v468
        %536 = vmatprep.subr.mxu0 0.0
        %537 = vmatpush1.msra.mxu0 0.0
        %538 = vmatprep.subr.mxu0 0.0
        %539 = vmatpush1.msra.mxu0 0.0
        %540 = vmatprep.subr.mxu0 0.0
        %541 = vmatpush1.msra.mxu0 0.0
        %542 = vmatprep.subr.mxu0 0.0
        %543 = vmatpush1.msra.mxu0 0.0
        %544 = vmatprep.subr.mxu0 0.0
        %545 = vmatpush1.msra.mxu0 0.0
        %546 = vmatprep.subr.mxu0 0.0
        %547 = vmatpush1.msra.mxu0 0.0
        %548 = vmatprep.subr.mxu0 0.0
        %549 = vmatpush1.msra.mxu0 0.0
        %550 = vmatprep.subr.mxu0 0.0
        %551 = vmatpush1.msra.mxu0 0.0
        %552 = vmatprep.subr.mxu0 0.0
        %553 = vmatpush1.msra.mxu0 0.0
        %554 = vmatprep.subr.mxu0 0.0
        %555 = vmatpush1.msra.mxu0 0.0
        %556 = vmatprep.subr.mxu0 0.0
        %557 = vmatpush1.msra.mxu0 0.0
        %558 = vmatprep.subr.mxu0 0.0
        %559 = vmatpush1.msra.mxu0 0.0
        %560 = vmatprep.subr.mxu0 0.0
        %561 = vmatpush1.msra.mxu0 0.0
        %562 = vmatprep.subr.mxu0 0.0
        %563 = vmatpush1.msra.mxu0 0.0
        %564 = vmatprep.subr.mxu0 0.0
        %565 = vmatpush1.msra.mxu0 0.0
        %566 = vmatprep.subr.mxu0 0.0
        %567 = vmatpush1.msra.mxu0 0.0
        %568 = vmatprep.subr.mxu0 0.0
        %569 = vmatpush1.msra.mxu0 0.0
        %570 = vmatprep.subr.mxu0 0.0
        %571 = vmatpush1.msra.mxu0 0.0
        %572 = vmatprep.subr.mxu0 0.0
        %573 = vmatpush1.msra.mxu0 0.0
        %574 = vmatprep.subr.mxu0 0.0
        %575 = vmatpush1.msra.mxu0 0.0
        %576 = vmatprep.subr.mxu0 0.0
        %577 = vmatpush1.msra.mxu0 0.0
        %578 = vmatprep.subr.mxu0 0.0
        %579 = vmatpush1.msra.mxu0 0.0
        %580 = vmatprep.subr.mxu0 0.0
        %581 = vmatpush1.msra.mxu0 0.0
        %582 = vmatprep.subr.mxu0 0.0
        %583 = vmatpush1.msra.mxu0 0.0
        %584 = vmatprep.subr.mxu0 0.0
        %585 = vmatpush1.msra.mxu0 0.0
        %586 = vmatprep.subr.mxu0 0.0
        %587 = vmatpush1.msra.mxu0 0.0
        %588 = vmatprep.subr.mxu0 0.0
        %589 = vmatpush1.msra.mxu0 0.0
        %590 = vmatprep.subr.mxu0 0.0
        %591 = vmatpush1.msra.mxu0 0.0
        %592 = vmatprep.subr.mxu0 0.0
        %593 = vmatpush1.msra.mxu0 0.0
        %594 = vmatprep.mubr.f32.mxu0 0.0
        %595 = vmatmul.mubr.f32.gmra.mrb[0].mxu0 %v513
        %v596 = vpop.f32.mrb[0].mxu0
        %v597 = vadd.f32 %v485, %v596
        %v598 = vpop.f32.mrb[0].mxu0
        %v599 = vadd.f32 %v485, %v598
        %600 = vmatprep.mubr.f32.mxu0 0.0
        %601 = vmatmul.mubr.f32.gmra.mrb[0].mxu0 %v516
        %v602 = vpop.f32.mrb[0].mxu0
        %v603 = vadd.f32 %v490, %v602
        %v604 = vpop.f32.mrb[0].mxu0
        %v605 = vadd.f32 %v490, %v604
        %606 = vmatprep.mubr.f32.mxu0 0.0
        %607 = vmatmul.mubr.f32.gmra.mrb[0].mxu0 %v519
        %v608 = vpop.f32.mrb[0].mxu0
        %v609 = vadd.f32 %v495, %v608
        %v610 = vpop.f32.mrb[0].mxu0
        %v611 = vadd.f32 %v495, %v610
        %612 = vmatprep.mubr.f32.mxu0 0.0
        %613 = vmatmul.mubr.f32.gmra.mrb[0].mxu0 %v522
        %v614 = vpop.f32.mrb[0].mxu0
        %v615 = vadd.f32 %v500, %v614
        %v616 = vpop.f32.mrb[0].mxu0
        %v617 = vadd.f32 %v500, %v616
        %618 = vmatprep.mubr.f32.mxu0 0.0
        %619 = vmatmul.mubr.f32.gmra.mrb[0].mxu0 %v525
        %v620 = vpop.f32.mrb[0].mxu0
        %v621 = vadd.f32 %v505, %v620
        %v622 = vpop.f32.mrb[0].mxu0
        %v623 = vadd.f32 %v505, %v622
        %624 = vmatprep.mubr.f32.mxu0 0.0
        %625 = vmatmul.mubr.f32.gmra.mrb[0].mxu0 %v528
        %v626 = vpop.f32.mrb[0].mxu0
        %v627 = vadd.f32 %v510, %v626
        %v628 = vpop.f32.mrb[0].mxu0
        %v629 = vadd.f32 %v510, %v628
        %630 = vdwg.mxu0
        %v631 = vmul.f32 %v597, 0.5
        %v632 = vmul.f32 %v599, 0.5
        %v633 = vmul.f32 %v603, 0.5
        %v634 = vmul.f32 %v605, 0.5
        %v635 = vmul.f32 %v609, 0.5
        %v636 = vmul.f32 %v611, 0.5
        %v637 = vtanh.pop %v631
        %v638 = vtanh.pop %v632
        %v639 = vtanh.pop %v633
        %v640 = vtanh.pop %v634
        %v641 = vtanh.pop %v635
        %v642 = vtanh.pop %v636
        %v643 = vmul.f32 %v637, 2.0
        %v644 = vmul.f32 %v638, 2.0
        %v645 = vmul.f32 %v639, 2.0
        %v646 = vmul.f32 %v640, 2.0
        %v647 = vmul.f32 %v641, 2.0
        %v648 = vmul.f32 %v642, 2.0
        %v649 = vmul.f32 %v643, 1.442695
        %v650 = vpow.pop %v649
        %v651 = vmul.f32 %v644, 1.442695
        %v652 = vpow.pop %v651
        %v653 = vmul.f32 %v645, 1.442695
        %v654 = vpow.pop %v653
        %v655 = vmul.f32 %v646, 1.442695
        %v656 = vpow.pop %v655
        %v657 = vmul.f32 %v647, 1.442695
        %v658 = vpow.pop %v657
        %v659 = vmul.f32 %v648, 1.442695
        %v660 = vpow.pop %v659
        %v661 = vmul.f32 %v650, %v260
        %v662 = vmul.f32 %v652, %v261
        %v663 = vmul.f32 %v654, %v262
        %v664 = vmul.f32 %v656, %v263
        %v665 = vmul.f32 %v658, %v264
        %v666 = vmul.f32 %v660, %v265
        %v667 = vadd.f32 %v661, %v615
        %v668 = vadd.f32 %v662, %v617
        %v669 = vadd.f32 %v663, %v621
        %v670 = vadd.f32 %v664, %v623
        %v671 = vadd.f32 %v665, %v627
        %v672 = vadd.f32 %v666, %v629
        %673 = vst [vmem:[%s242] sm:$0xff] %v464
        %674 = vst [vmem:[%s242 + $0x8] sm:$0xff] %v465
        %675 = vst [vmem:[%s242 + $0x10] sm:$0xff] %v466
        %676 = vst [vmem:[%s242 + $0x18] sm:$0xff] %v467
        %677 = vst [vmem:[%s242 + $0x20] sm:$0xff] %v468
        %678 = vst [vmem:[%s242 + $0x28] sm:$0xff] %v469
        %679 = vst [vmem:[%s242 + $0x30] sm:$0xff] %v667
        %680 = vst [vmem:[%s242 + $0x38] sm:$0xff] %v668
        %681 = vst [vmem:[%s242 + $0x40] sm:$0xff] %v669
        %682 = vst [vmem:[%s242 + $0x48] sm:$0xff] %v670
        %683 = vst [vmem:[%s242 + $0x50] sm:$0xff] %v671
        %684 = vst [vmem:[%s242 + $0x58] sm:$0xff] %v672
        %s685 = sand.u32 %s153, 1
        %s686 = scalar_lea.sflag [#allocation3], %s685
        %s687 = sand.u32 %s153, 1
        %s688 = smul.addr %s687, 96
        %s689 = scalar_lea.vmem [#allocation2], %s688
        // Predicated region
        $region41: #{tpu_custom_call.1} parent=39 // pred_check
          %p690 = pneg %p163
        $region42: #{tpu_custom_call.1} parent=39 // pred_check_branch
          %692 = sbr.rel (%p690) target = $region44
        $region43: #{tpu_custom_call.1} parent=39 // pred_region
          %s693 = smul.u32 2, %s24
          %s695 = ssub.s32 1536, 1536
          %696 = vsyncadd %s686, %s695
          %s697 = smul.addr %s23, 12
          %s698 = sadd.s32 %s693, %s697
          %s699 = smul.addr %s698, 128
          %s700 = scalar_lea.hbm %s5, %s699
          %s701 = sshll.u32 %s689, 4
          %s702 = int_to_ptr.vmem [resolvable:$true] %s701
          %707 = dma.vmem_to_hbm [thread:$0]  %s702, 1536, %s700, %s686, 256, 256, 16
        $region44: #{tpu_custom_call.1} parent=39 // pred_fallthru
          _
      $region40: #{tpu_custom_call.1} parent=5 // pred_fallthru
        _
      %p708 = scmp.le.s32.totalorder 2, %s14
      // Predicated region
      $region45: #{tpu_custom_call.1} parent=5 // pred_check
        %p709 = pneg %p708
      $region46: #{tpu_custom_call.1} parent=5 // pred_check_branch
        %711 = sbr.rel (%p709) target = $region48
      $region47: #{tpu_custom_call.1} parent=5 // pred_region
        %s712 = ssub.s32 %s14, 2
        // Predicated region
        $region49: #{tpu_custom_call.1} parent=47 // pred_check
          %p713 = pneg %p169
        $region50: #{tpu_custom_call.1} parent=47 // pred_check_branch
          %715 = sbr.rel (%p713) target = $region52
        $region51: #{tpu_custom_call.1} parent=47 // pred_region
          %s716 = sand.u32 %s154, 1
          %s717 = scalar_lea.sflag [#allocation3], %s716
          %s718 = sand.u32 %s154, 1
          %s719 = smul.addr %s718, 96
          %s720 = scalar_lea.vmem [#allocation2], %s719
          %721 = dma.done %s717, 1536
        $region52: #{tpu_custom_call.1} parent=47 // pred_fallthru
          _
      $region48: #{tpu_custom_call.1} parent=5 // pred_fallthru
        _
    $region6: #{tpu_custom_call.1} parent=1 // loop_footer
      %s18 = sadd.s32 1, %s14
    $region7: #{tpu_custom_call.1} parent=1 // loop_footer_branch
      %13 = sbr.rel target = $region3
    $region8: #{tpu_custom_call.1} parent=1 // loop_exit
      _
    %722 = vsyncpa [#allocation3], 1
    %s723 = scalar_lea.sflag [#allocation3], 1
    %724 = vsyncpa %s723, 1

</llo_original>
